<compile_context>
chip_gen: v7x
topology: tpu7x:2x2x1
jax: 0.10.0
libtpu: 0.0.40
codegen_flags: <defaults>
</compile_context>

<pallas_src>
import math

import jax
import jax.numpy as jnp
from jax.experimental import pallas as pl
from jax.experimental.pallas import tpu as pltpu


def down_kernel(xe_ref, xo_ref,
                w1_ref, b1_ref, w2_ref, b2_ref, w3_ref, b3_ref,
                o_ref):
    # xe[c, t] = x[c, 2t]   (even samples)
    # xo[c, t] = x[c, 2t+1] (odd samples)
    xe = xe_ref[...]          # (C_in, Lh)
    xo = xo_ref[...]          # (C_in, Lh)

    def shift_r(v):           # out[:, t] = v[:, t-1], zero at t=0
        z = jnp.zeros((v.shape[0], 1), v.dtype)
        return jnp.concatenate([z, v[:, :-1]], axis=1)

    def shift_l(v):           # out[:, t] = v[:, t+1], zero at t=Lh-1
        z = jnp.zeros((v.shape[0], 1), v.dtype)
        return jnp.concatenate([v[:, 1:], z], axis=1)

    def dot(w, v):            # MXU matmul, f32 accumulation
        return jnp.dot(w, v, preferred_element_type=jnp.float32)

    # --- Conv1d(C_in -> C_in, k=3, pad=1, stride=2); output t uses x[2t-1], x[2t], x[2t+1]
    h = (dot(w1_ref[0], shift_r(xo))
         + dot(w1_ref[1], xe)
         + dot(w1_ref[2], xo)
         + b1_ref[...])

    # --- Conv1d(C_in -> C_mid, k=3, pad=1) + ReLU
    h = (dot(w2_ref[0], shift_r(h))
         + dot(w2_ref[1], h)
         + dot(w2_ref[2], shift_l(h))
         + b2_ref[...])
    h = jnp.maximum(h, 0.0)

    # --- Conv1d(C_mid -> C_out, k=3, pad=1) + ReLU
    h = (dot(w3_ref[0], shift_r(h))
         + dot(w3_ref[1], h)
         + dot(w3_ref[2], shift_l(h))
         + b3_ref[...])
    o_ref[...] = jnp.maximum(h, 0.0).astype(o_ref.dtype)


def down_forward(x, params):
    """Pallas implementation of Down.forward.

    x: (B, C_in, L) float32
    params: (w1, b1, w2, b2, w3, b3) in PyTorch Conv1d layout:
        w*: (C_out, C_in, 3), b*: (C_out,)
    returns (B, C_out, ceil(L/2))
    """
    w1, b1, w2, b2, w3, b3 = params
    B, C_in, L = x.shape
    if L % 2:                              # pad one zero so L is even (matches ceil(L/2))
        x = jnp.pad(x, ((0, 0), (0, 0), (0, 1)))
        L += 1
    Lh = L // 2
    C_mid = w2.shape[0]
    C_out = w3.shape[0]

    # Even/odd de-interleave once in the wrapper (kernel then needs no strided lane loads).
    x_even = x[:, :, 0::2]                 # (B, C_in, Lh)
    x_odd = x[:, :, 1::2]                  # (B, C_in, Lh)

    # Reorder weights to (K, C_out, C_in) so the kernel indexes one tap per matmul.
    w1t = jnp.transpose(w1, (2, 0, 1)).astype(jnp.float32)
    w2t = jnp.transpose(w2, (2, 0, 1)).astype(jnp.float32)
    w3t = jnp.transpose(w3, (2, 0, 1)).astype(jnp.float32)
    b1c = b1.astype(jnp.float32)[:, None]  # (C, 1) broadcasts along lanes
    b2c = b2.astype(jnp.float32)[:, None]
    b3c = b3.astype(jnp.float32)[:, None]

    out = pl.pallas_call(
        down_kernel,
        out_shape=jax.ShapeDtypeStruct((B, C_out, Lh), jnp.float32),
        grid=(B,),
        in_specs=[
            pl.BlockSpec((None, C_in, Lh), lambda b: (b, 0, 0)),   # x_even
            pl.BlockSpec((None, C_in, Lh), lambda b: (b, 0, 0)),   # x_odd
            pl.BlockSpec((3, C_in, C_in), lambda b: (0, 0, 0)),    # w1 (strided conv)
            pl.BlockSpec((C_in, 1), lambda b: (0, 0)),             # b1
            pl.BlockSpec((3, C_mid, C_in), lambda b: (0, 0, 0)),   # w2
            pl.BlockSpec((C_mid, 1), lambda b: (0, 0)),            # b2
            pl.BlockSpec((3, C_out, C_mid), lambda b: (0, 0, 0)),  # w3
            pl.BlockSpec((C_out, 1), lambda b: (0, 0)),            # b3
        ],
        out_specs=pl.BlockSpec((None, C_out, Lh), lambda b: (b, 0, 0)),
        compiler_params=pltpu.CompilerParams(
            dimension_semantics=("parallel",)),
    )(x_even, x_odd, w1t, b1c, w2t, b2c, w3t, b3c)
    return out


# ----------------------- pure-JAX reference (for checking) -----------------------

def _conv1d_ref(x, w, b, stride=1, padding=1):
    y = jax.lax.conv_general_dilated(
        x, w, window_strides=(stride,), padding=[(padding, padding)],
        dimension_numbers=("NCH", "OIH", "NCH"))
    return y + b[None, :, None]


def down_reference(x, params):
    w1, b1, w2, b2, w3, b3 = params
    h = _conv1d_ref(x, w1, b1, stride=2)
    h = jax.nn.relu(_conv1d_ref(h, w2, b2))
    h = jax.nn.relu(_conv1d_ref(h, w3, b3))
    return h


if __name__ == "__main__":
    # Small shapes consistent with the module: batch=2, in_channels=4,
    # out_channels=8, seq length=16.
    B, C_in, C_out, L = 2, 4, 8, 16

    key = jax.random.PRNGKey(0)
    kx, k1, k2, k3 = jax.random.split(key, 4)

    def init_conv(k, c_out, c_in, ksize=3):
        kw, kb = jax.random.split(k)
        bound = 1.0 / math.sqrt(c_in * ksize)   # PyTorch default init range
        w = jax.random.uniform(kw, (c_out, c_in, ksize), jnp.float32, -bound, bound)
        b = jax.random.uniform(kb, (c_out,), jnp.float32, -bound, bound)
        return w, b

    x = jax.random.normal(kx, (B, C_in, L), dtype=jnp.float32)
    w1, b1 = init_conv(k1, C_in, C_in)      # Conv1d(C_in, C_in, k=3, p=1, s=2)
    w2, b2 = init_conv(k2, C_out, C_in)     # DoubleConv conv #1
    w3, b3 = init_conv(k3, C_out, C_out)    # DoubleConv conv #2
    params = (w1, b1, w2, b2, w3, b3)

    out = down_forward(x, params)
    out = jax.block_until_ready(out)

    assert out.shape == (B, C_out, L // 2), out.shape

    ref = down_reference(x, params)
    err = float(jnp.max(jnp.abs(out - ref)))
    assert err < 1e-4, f"max abs err vs reference: {err}"

    print("KERNEL_OK")
</pallas_src>

<mosaic_0001>
module attributes {stable_mosaic.version = 11 : i64} {
  func.func @down_kernel(%arg0: i32, %arg1: memref<1x4x8xf32, #tpu.memory_space<vmem>>, %arg2: memref<1x4x8xf32, #tpu.memory_space<vmem>>, %arg3: memref<3x4x4xf32, #tpu.memory_space<vmem>>, %arg4: memref<4x1xf32, #tpu.memory_space<vmem>>, %arg5: memref<3x8x4xf32, #tpu.memory_space<vmem>>, %arg6: memref<8x1xf32, #tpu.memory_space<vmem>>, %arg7: memref<3x8x8xf32, #tpu.memory_space<vmem>>, %arg8: memref<8x1xf32, #tpu.memory_space<vmem>>, %arg9: memref<1x8x8xf32, #tpu.memory_space<vmem>>) attributes {dimension_semantics = [#tpu.dimension_semantics<parallel>], iteration_bounds = array<i64: 2>, scalar_prefetch = 0 : i64, scratch_operands = 0 : i64, tpu.core_type = #tpu.core_type<tc>, window_params = [{transform_indices = @transform_0, window_bounds = array<i64: 1, 4, 8>}, {transform_indices = @transform_1, window_bounds = array<i64: 1, 4, 8>}, {pipeline_mode = #tpu.pipeline_mode<synchronous>, transform_indices = @transform_2, window_bounds = array<i64: 3, 4, 4>}, {pipeline_mode = #tpu.pipeline_mode<synchronous>, transform_indices = @transform_3, window_bounds = array<i64: 4, 1>}, {pipeline_mode = #tpu.pipeline_mode<synchronous>, transform_indices = @transform_4, window_bounds = array<i64: 3, 8, 4>}, {pipeline_mode = #tpu.pipeline_mode<synchronous>, transform_indices = @transform_5, window_bounds = array<i64: 8, 1>}, {pipeline_mode = #tpu.pipeline_mode<synchronous>, transform_indices = @transform_6, window_bounds = array<i64: 3, 8, 8>}, {pipeline_mode = #tpu.pipeline_mode<synchronous>, transform_indices = @transform_7, window_bounds = array<i64: 8, 1>}, {transform_indices = @transform_8, window_bounds = array<i64: 1, 8, 8>}]} {
    %c0 = arith.constant 0 : index
    %c0_0 = arith.constant 0 : index
    %c0_1 = arith.constant 0 : index
    %0 = vector.load %arg1[%c0, %c0_0, %c0_1] : memref<1x4x8xf32, #tpu.memory_space<vmem>>, vector<1x4x8xf32>
    %1 = vector.shape_cast %0 : vector<1x4x8xf32> to vector<4x8xf32>
    %c0_2 = arith.constant 0 : index
    %c0_3 = arith.constant 0 : index
    %c0_4 = arith.constant 0 : index
    %2 = vector.load %arg2[%c0_2, %c0_3, %c0_4] : memref<1x4x8xf32, #tpu.memory_space<vmem>>, vector<1x4x8xf32>
    %3 = vector.shape_cast %2 : vector<1x4x8xf32> to vector<4x8xf32>
    %c0_5 = arith.constant 0 : index
    %c0_6 = arith.constant 0 : index
    %c0_7 = arith.constant 0 : index
    %4 = vector.load %arg3[%c0_5, %c0_6, %c0_7] : memref<3x4x4xf32, #tpu.memory_space<vmem>>, vector<1x4x4xf32>
    %5 = vector.shape_cast %4 : vector<1x4x4xf32> to vector<4x4xf32>
    %cst = arith.constant 0.000000e+00 : f32
    %6 = vector.broadcast %cst : f32 to vector<4x1xf32>
    %7 = vector.extract_strided_slice %3 {offsets = [0, 0], sizes = [4, 7], strides = [1, 1]} : vector<4x8xf32> to vector<4x7xf32>
    %8 = tpu.concatenate %6, %7 in 1 : vector<4x1xf32>, vector<4x7xf32> -> vector<4x8xf32>
    %cst_8 = arith.constant dense<0.000000e+00> : vector<4x8xf32>
    %9 = tpu.matmul %5, %8, %cst_8 {dimension_numbers = #tpu.dot_dimension_numbers<[1], [0], [0], [1], [0, 0, 1, 1], [], []>} : vector<4x4xf32>, vector<4x8xf32>, vector<4x8xf32> -> vector<4x8xf32>
    %c1 = arith.constant 1 : index
    %c0_9 = arith.constant 0 : index
    %c0_10 = arith.constant 0 : index
    %10 = vector.load %arg3[%c1, %c0_9, %c0_10] : memref<3x4x4xf32, #tpu.memory_space<vmem>>, vector<1x4x4xf32>
    %11 = vector.shape_cast %10 : vector<1x4x4xf32> to vector<4x4xf32>
    %cst_11 = arith.constant dense<0.000000e+00> : vector<4x8xf32>
    %12 = tpu.matmul %11, %1, %cst_11 {dimension_numbers = #tpu.dot_dimension_numbers<[1], [0], [0], [1], [0, 0, 1, 1], [], []>} : vector<4x4xf32>, vector<4x8xf32>, vector<4x8xf32> -> vector<4x8xf32>
    %13 = arith.addf %9, %12 : vector<4x8xf32>
    %c2 = arith.constant 2 : index
    %c0_12 = arith.constant 0 : index
    %c0_13 = arith.constant 0 : index
    %14 = vector.load %arg3[%c2, %c0_12, %c0_13] : memref<3x4x4xf32, #tpu.memory_space<vmem>>, vector<1x4x4xf32>
    %15 = vector.shape_cast %14 : vector<1x4x4xf32> to vector<4x4xf32>
    %cst_14 = arith.constant dense<0.000000e+00> : vector<4x8xf32>
    %16 = tpu.matmul %15, %3, %cst_14 {dimension_numbers = #tpu.dot_dimension_numbers<[1], [0], [0], [1], [0, 0, 1, 1], [], []>} : vector<4x4xf32>, vector<4x8xf32>, vector<4x8xf32> -> vector<4x8xf32>
    %17 = arith.addf %13, %16 : vector<4x8xf32>
    %c0_15 = arith.constant 0 : index
    %c0_16 = arith.constant 0 : index
    %18 = vector.load %arg4[%c0_15, %c0_16] : memref<4x1xf32, #tpu.memory_space<vmem>>, vector<4x1xf32>
    %19 = vector.broadcast %18 : vector<4x1xf32> to vector<4x8xf32>
    %20 = arith.addf %17, %19 : vector<4x8xf32>
    %c0_17 = arith.constant 0 : index
    %c0_18 = arith.constant 0 : index
    %c0_19 = arith.constant 0 : index
    %21 = vector.load %arg5[%c0_17, %c0_18, %c0_19] : memref<3x8x4xf32, #tpu.memory_space<vmem>>, vector<1x8x4xf32>
    %22 = vector.shape_cast %21 : vector<1x8x4xf32> to vector<8x4xf32>
    %cst_20 = arith.constant 0.000000e+00 : f32
    %23 = vector.broadcast %cst_20 : f32 to vector<4x1xf32>
    %24 = vector.extract_strided_slice %20 {offsets = [0, 0], sizes = [4, 7], strides = [1, 1]} : vector<4x8xf32> to vector<4x7xf32>
    %25 = tpu.concatenate %23, %24 in 1 : vector<4x1xf32>, vector<4x7xf32> -> vector<4x8xf32>
    %cst_21 = arith.constant dense<0.000000e+00> : vector<8x8xf32>
    %26 = tpu.matmul %22, %25, %cst_21 {dimension_numbers = #tpu.dot_dimension_numbers<[1], [0], [0], [1], [0, 0, 1, 1], [], []>} : vector<8x4xf32>, vector<4x8xf32>, vector<8x8xf32> -> vector<8x8xf32>
    %c1_22 = arith.constant 1 : index
    %c0_23 = arith.constant 0 : index
    %c0_24 = arith.constant 0 : index
    %27 = vector.load %arg5[%c1_22, %c0_23, %c0_24] : memref<3x8x4xf32, #tpu.memory_space<vmem>>, vector<1x8x4xf32>
    %28 = vector.shape_cast %27 : vector<1x8x4xf32> to vector<8x4xf32>
    %cst_25 = arith.constant dense<0.000000e+00> : vector<8x8xf32>
    %29 = tpu.matmul %28, %20, %cst_25 {dimension_numbers = #tpu.dot_dimension_numbers<[1], [0], [0], [1], [0, 0, 1, 1], [], []>} : vector<8x4xf32>, vector<4x8xf32>, vector<8x8xf32> -> vector<8x8xf32>
    %30 = arith.addf %26, %29 : vector<8x8xf32>
    %c2_26 = arith.constant 2 : index
    %c0_27 = arith.constant 0 : index
    %c0_28 = arith.constant 0 : index
    %31 = vector.load %arg5[%c2_26, %c0_27, %c0_28] : memref<3x8x4xf32, #tpu.memory_space<vmem>>, vector<1x8x4xf32>
    %32 = vector.shape_cast %31 : vector<1x8x4xf32> to vector<8x4xf32>
    %cst_29 = arith.constant 0.000000e+00 : f32
    %33 = vector.broadcast %cst_29 : f32 to vector<4x1xf32>
    %34 = vector.extract_strided_slice %20 {offsets = [0, 1], sizes = [4, 7], strides = [1, 1]} : vector<4x8xf32> to vector<4x7xf32>
    %35 = tpu.concatenate %34, %33 in 1 : vector<4x7xf32>, vector<4x1xf32> -> vector<4x8xf32>
    %cst_30 = arith.constant dense<0.000000e+00> : vector<8x8xf32>
    %36 = tpu.matmul %32, %35, %cst_30 {dimension_numbers = #tpu.dot_dimension_numbers<[1], [0], [0], [1], [0, 0, 1, 1], [], []>} : vector<8x4xf32>, vector<4x8xf32>, vector<8x8xf32> -> vector<8x8xf32>
    %37 = arith.addf %30, %36 : vector<8x8xf32>
    %c0_31 = arith.constant 0 : index
    %c0_32 = arith.constant 0 : index
    %38 = vector.load %arg6[%c0_31, %c0_32] : memref<8x1xf32, #tpu.memory_space<vmem>>, vector<8x1xf32>
    %39 = vector.broadcast %38 : vector<8x1xf32> to vector<8x8xf32>
    %40 = arith.addf %37, %39 : vector<8x8xf32>
    %cst_33 = arith.constant 0.000000e+00 : f32
    %41 = vector.broadcast %cst_33 : f32 to vector<8x8xf32>
    %42 = arith.maximumf %40, %41 : vector<8x8xf32>
    %c0_34 = arith.constant 0 : index
    %c0_35 = arith.constant 0 : index
    %c0_36 = arith.constant 0 : index
    %43 = vector.load %arg7[%c0_34, %c0_35, %c0_36] : memref<3x8x8xf32, #tpu.memory_space<vmem>>, vector<1x8x8xf32>
    %44 = vector.shape_cast %43 : vector<1x8x8xf32> to vector<8x8xf32>
    %cst_37 = arith.constant 0.000000e+00 : f32
    %45 = vector.broadcast %cst_37 : f32 to vector<8x1xf32>
    %46 = vector.extract_strided_slice %42 {offsets = [0, 0], sizes = [8, 7], strides = [1, 1]} : vector<8x8xf32> to vector<8x7xf32>
    %47 = tpu.concatenate %45, %46 in 1 : vector<8x1xf32>, vector<8x7xf32> -> vector<8x8xf32>
    %cst_38 = arith.constant dense<0.000000e+00> : vector<8x8xf32>
    %48 = tpu.matmul %44, %47, %cst_38 {dimension_numbers = #tpu.dot_dimension_numbers<[1], [0], [0], [1], [0, 0, 1, 1], [], []>} : vector<8x8xf32>, vector<8x8xf32>, vector<8x8xf32> -> vector<8x8xf32>
    %c1_39 = arith.constant 1 : index
    %c0_40 = arith.constant 0 : index
    %c0_41 = arith.constant 0 : index
    %49 = vector.load %arg7[%c1_39, %c0_40, %c0_41] : memref<3x8x8xf32, #tpu.memory_space<vmem>>, vector<1x8x8xf32>
    %50 = vector.shape_cast %49 : vector<1x8x8xf32> to vector<8x8xf32>
    %cst_42 = arith.constant dense<0.000000e+00> : vector<8x8xf32>
    %51 = tpu.matmul %50, %42, %cst_42 {dimension_numbers = #tpu.dot_dimension_numbers<[1], [0], [0], [1], [0, 0, 1, 1], [], []>} : vector<8x8xf32>, vector<8x8xf32>, vector<8x8xf32> -> vector<8x8xf32>
    %52 = arith.addf %48, %51 : vector<8x8xf32>
    %c2_43 = arith.constant 2 : index
    %c0_44 = arith.constant 0 : index
    %c0_45 = arith.constant 0 : index
    %53 = vector.load %arg7[%c2_43, %c0_44, %c0_45] : memref<3x8x8xf32, #tpu.memory_space<vmem>>, vector<1x8x8xf32>
    %54 = vector.shape_cast %53 : vector<1x8x8xf32> to vector<8x8xf32>
    %cst_46 = arith.constant 0.000000e+00 : f32
    %55 = vector.broadcast %cst_46 : f32 to vector<8x1xf32>
    %56 = vector.extract_strided_slice %42 {offsets = [0, 1], sizes = [8, 7], strides = [1, 1]} : vector<8x8xf32> to vector<8x7xf32>
    %57 = tpu.concatenate %56, %55 in 1 : vector<8x7xf32>, vector<8x1xf32> -> vector<8x8xf32>
    %cst_47 = arith.constant dense<0.000000e+00> : vector<8x8xf32>
    %58 = tpu.matmul %54, %57, %cst_47 {dimension_numbers = #tpu.dot_dimension_numbers<[1], [0], [0], [1], [0, 0, 1, 1], [], []>} : vector<8x8xf32>, vector<8x8xf32>, vector<8x8xf32> -> vector<8x8xf32>
    %59 = arith.addf %52, %58 : vector<8x8xf32>
    %c0_48 = arith.constant 0 : index
    %c0_49 = arith.constant 0 : index
    %60 = vector.load %arg8[%c0_48, %c0_49] : memref<8x1xf32, #tpu.memory_space<vmem>>, vector<8x1xf32>
    %61 = vector.broadcast %60 : vector<8x1xf32> to vector<8x8xf32>
    %62 = arith.addf %59, %61 : vector<8x8xf32>
    %cst_50 = arith.constant 0.000000e+00 : f32
    %63 = vector.broadcast %cst_50 : f32 to vector<8x8xf32>
    %64 = arith.maximumf %62, %63 : vector<8x8xf32>
    %c0_51 = arith.constant 0 : index
    %c0_52 = arith.constant 0 : index
    %c0_53 = arith.constant 0 : index
    %65 = vector.load %arg9[%c0_51, %c0_52, %c0_53] : memref<1x8x8xf32, #tpu.memory_space<vmem>>, vector<1x8x8xf32>
    %66 = vector.shape_cast %65 : vector<1x8x8xf32> to vector<8x8xf32>
    %67 = vector.shape_cast %64 : vector<8x8xf32> to vector<1x8x8xf32>
    tpu.vector_store %arg9[%c0_51, %c0_52, %c0_53], %67 {strides = array<i32>} : memref<1x8x8xf32, #tpu.memory_space<vmem>>, vector<1x8x8xf32>,
    return
  }
  func.func @transform_0(%arg0: i32) -> (i32, i32, i32) {
    %c0_i32 = arith.constant 0 : i32
    %c0_i32_0 = arith.constant 0 : i32
    %c0_i32_1 = arith.constant 0 : i32
    return %arg0, %c0_i32, %c0_i32_0 : i32, i32, i32
  }
  func.func @transform_1(%arg0: i32) -> (i32, i32, i32) {
    %c0_i32 = arith.constant 0 : i32
    %c0_i32_0 = arith.constant 0 : i32
    %c0_i32_1 = arith.constant 0 : i32
    return %arg0, %c0_i32, %c0_i32_0 : i32, i32, i32
  }
  func.func @transform_2(%arg0: i32) -> (i32, i32, i32) {
    %c0_i32 = arith.constant 0 : i32
    %c0_i32_0 = arith.constant 0 : i32
    %c0_i32_1 = arith.constant 0 : i32
    %c0_i32_2 = arith.constant 0 : i32
    return %c0_i32, %c0_i32_0, %c0_i32_1 : i32, i32, i32
  }
  func.func @transform_3(%arg0: i32) -> (i32, i32) {
    %c0_i32 = arith.constant 0 : i32
    %c0_i32_0 = arith.constant 0 : i32
    %c0_i32_1 = arith.constant 0 : i32
    return %c0_i32, %c0_i32_0 : i32, i32
  }
  func.func @transform_4(%arg0: i32) -> (i32, i32, i32) {
    %c0_i32 = arith.constant 0 : i32
    %c0_i32_0 = arith.constant 0 : i32
    %c0_i32_1 = arith.constant 0 : i32
    %c0_i32_2 = arith.constant 0 : i32
    return %c0_i32, %c0_i32_0, %c0_i32_1 : i32, i32, i32
  }
  func.func @transform_5(%arg0: i32) -> (i32, i32) {
    %c0_i32 = arith.constant 0 : i32
    %c0_i32_0 = arith.constant 0 : i32
    %c0_i32_1 = arith.constant 0 : i32
    return %c0_i32, %c0_i32_0 : i32, i32
  }
  func.func @transform_6(%arg0: i32) -> (i32, i32, i32) {
    %c0_i32 = arith.constant 0 : i32
    %c0_i32_0 = arith.constant 0 : i32
    %c0_i32_1 = arith.constant 0 : i32
    %c0_i32_2 = arith.constant 0 : i32
    return %c0_i32, %c0_i32_0, %c0_i32_1 : i32, i32, i32
  }
  func.func @transform_7(%arg0: i32) -> (i32, i32) {
    %c0_i32 = arith.constant 0 : i32
    %c0_i32_0 = arith.constant 0 : i32
    %c0_i32_1 = arith.constant 0 : i32
    return %c0_i32, %c0_i32_0 : i32, i32
  }
  func.func @transform_8(%arg0: i32) -> (i32, i32, i32) {
    %c0_i32 = arith.constant 0 : i32
    %c0_i32_0 = arith.constant 0 : i32
    %c0_i32_1 = arith.constant 0 : i32
    return %arg0, %c0_i32, %c0_i32_0 : i32, i32, i32
  }
}

</mosaic_0001>

<llo_original>
// kernel: tpu_custom_call.1
$region0: #{tpu_custom_call.1}
  #allocation0 [shape = 'u32[]', space=smem, size = 0x4, offset = 0x4, fixed_abs, tag = 'smem constant byte address 0x4 - core index']
  #allocation1 [shape = 'u32[144,128]{1,0:T(1,128)}', space=vmem, size = 0x12000, scoped, tag = 'internal scratch']
  %s0 = inlined_call_operand.vmem [shape: f32[2,4,8], index: 0, kind: input, shape index: {}]
  %s1 = inlined_call_operand.hbm [shape: f32[2,4,8], index: 1, kind: input, shape index: {}]
  %s2 = inlined_call_operand.vmem [shape: f32[3,4,4], index: 2, kind: input, shape index: {}]
  %s3 = inlined_call_operand.vmem [shape: f32[4,1], index: 3, kind: input, shape index: {}]
  %s4 = inlined_call_operand.vmem [shape: f32[3,8,4], index: 4, kind: input, shape index: {}]
  %s5 = inlined_call_operand.vmem [shape: f32[8,1], index: 5, kind: input, shape index: {}]
  %s6 = inlined_call_operand.vmem [shape: f32[3,8,8], index: 6, kind: input, shape index: {}]
  %s7 = inlined_call_operand.vmem [shape: f32[8,1], index: 7, kind: input, shape index: {}]
  %s8 = inlined_call_operand.hbm [shape: f32[2,8,8], index: 8, kind: output, shape index: {}]
  %s9 = sld [smem:[#allocation0]]
  $region69: #{tpu_custom_call.1} parent=0
    _
  %s11 = ssub.s32 1, %s9
  %s12 = scalar_select 0, %s11, %s9
  $region1: #{tpu_custom_call.1} parent=0
    #allocation2 [shape = 'u8[4096]{0}', space=vmem, size = 0x1000, scoped, tag = 'input window, operand 1']
    #allocation3 [shape = 's32[2]{0}', space=sflag, size = 0x8, scoped, tag = 'scoped memory for tpu_custom_call.1']
    #allocation4 [shape = 's32[2]{0}', space=sflag, size = 0x8, scoped, tag = 'scoped memory for tpu_custom_call.1']
    #allocation5 [shape = 'u8[8192]{0}', space=vmem, size = 0x2000, scoped, tag = 'output window, operand 0']
    %13 = vsyncpa [#allocation3], 0
    %s14 = scalar_lea.sflag [#allocation3], 1
    %15 = vsyncpa %s14, 0
    %16 = vsyncpa [#allocation4], 0
    %s17 = scalar_lea.sflag [#allocation4], 1
    %18 = vsyncpa %s17, 0
    loop: start=0, step=1, limit=4
    $region2: #{tpu_custom_call.1} parent=1 // loop_pre_header
      _
    $region3: #{tpu_custom_call.1} parent=1 // loop_header
      %s20 = sphi 0, %s24
      %p21 = scmp.ge.s32.totalorder %s20, 4
      %s30 = sphi 0, %s32
      %s33 = sphi 0, %s30
      %s34 = sphi 0, %s33
      %s50 = sphi 0, %s34
      %s56 = sphi 0, %s58
      %s59 = sphi 0, %s56
      %s60 = sphi 0, %s59
      %s76 = sphi 0, %s60
      %s80 = sphi 0, %s80
      %s82 = sphi 0, %s80
      %s83 = sphi 0, %s82
      %s97 = sphi 0, %s83
      %s101 = sphi 0, %s101
      %s103 = sphi 0, %s101
      %s104 = sphi 0, %s103
      %s118 = sphi 0, %s104
      %s122 = sphi 0, %s122
      %s124 = sphi 0, %s122
      %s125 = sphi 0, %s124
      %s139 = sphi 0, %s125
      %s143 = sphi 0, %s143
      %s145 = sphi 0, %s143
      %s146 = sphi 0, %s145
      %s160 = sphi 0, %s146
      %s164 = sphi 0, %s164
      %s166 = sphi 0, %s164
      %s167 = sphi 0, %s166
      %s181 = sphi 0, %s167
      %s185 = sphi 0, %s185
      %s187 = sphi 0, %s185
      %s188 = sphi 0, %s187
      %s202 = sphi 0, %s188
      %s208 = sphi 0, %s210
      %s211 = sphi 0, %s208
      %s212 = sphi 0, %s211
      %s228 = sphi 0, %s212
    $region4: #{tpu_custom_call.1} parent=1 // loop_header_branch
      %23 = sbr.rel (%p21) target = $region8
    $region5: #{tpu_custom_call.1} parent=1 // loop_body
      %s25 = ssub.s32 %s20, 1
      %s26 = ssub.s32 %s20, 2
      %s27 = sadd.s32 %s20, 1
      %s28 = ssub.s32 %s20, %s27
      %p29 = scmp.eq.s32.totalorder %s28, 0
      %s31 = sadd.s32 %s30, 1
      %s32 = scalar_select %p29, %s30, %s31
      %p35 = pneg %p29
      %p36 = scmp.eq.s32.totalorder %s20, 1
      %p37 = por %p35, %p36
      %p38 = scmp.ne.s32.totalorder %s30, %s33
      %p39 = scmp.eq.s32.totalorder %s20, 0
      %p40 = por %p38, %p39
      %p41 = scmp.ne.s32.totalorder %s30, %s33
      %p42 = scmp.eq.s32.totalorder %s25, 1
      %p43 = por %p41, %p42
      %p44 = scmp.ne.s32.totalorder %s33, %s34
      %p45 = scmp.eq.s32.totalorder %s25, 0
      %p46 = por %p44, %p45
      %p47 = scmp.ne.s32.totalorder %s33, %s34
      %p48 = scmp.eq.s32.totalorder %s26, 1
      %p49 = por %p47, %p48
      %p51 = scmp.ne.s32.totalorder %s34, %s50
      %p52 = scmp.eq.s32.totalorder %s26, 0
      %p53 = por %p51, %p52
      %s54 = ssub.s32 %s20, %s27
      %p55 = scmp.eq.s32.totalorder %s54, 0
      %s57 = sadd.s32 %s56, 1
      %s58 = scalar_select %p55, %s56, %s57
      %p61 = pneg %p55
      %p62 = scmp.eq.s32.totalorder %s20, 1
      %p63 = por %p61, %p62
      %p64 = scmp.ne.s32.totalorder %s56, %s59
      %p65 = scmp.eq.s32.totalorder %s20, 0
      %p66 = por %p64, %p65
      %p67 = scmp.ne.s32.totalorder %s56, %s59
      %p68 = scmp.eq.s32.totalorder %s25, 1
      %p69 = por %p67, %p68
      %p70 = scmp.ne.s32.totalorder %s59, %s60
      %p71 = scmp.eq.s32.totalorder %s25, 0
      %p72 = por %p70, %p71
      %p73 = scmp.ne.s32.totalorder %s59, %s60
      %p74 = scmp.eq.s32.totalorder %s26, 1
      %p75 = por %p73, %p74
      %p77 = scmp.ne.s32.totalorder %s60, %s76
      %p78 = scmp.eq.s32.totalorder %s26, 0
      %p79 = por %p77, %p78
      %s81 = sadd.s32 %s80, 1
      %p84 = scmp.eq.s32.totalorder %s20, 1
      %p85 = scmp.ne.s32.totalorder %s80, %s82
      %p86 = scmp.eq.s32.totalorder %s20, 0
      %p87 = por %p85, %p86
      %p88 = scmp.ne.s32.totalorder %s80, %s82
      %p89 = scmp.eq.s32.totalorder %s25, 1
      %p90 = por %p88, %p89
      %p91 = scmp.ne.s32.totalorder %s82, %s83
      %p92 = scmp.eq.s32.totalorder %s25, 0
      %p93 = por %p91, %p92
      %p94 = scmp.ne.s32.totalorder %s82, %s83
      %p95 = scmp.eq.s32.totalorder %s26, 1
      %p96 = por %p94, %p95
      %p98 = scmp.ne.s32.totalorder %s83, %s97
      %p99 = scmp.eq.s32.totalorder %s26, 0
      %p100 = por %p98, %p99
      %s102 = sadd.s32 %s101, 1
      %p105 = scmp.eq.s32.totalorder %s20, 1
      %p106 = scmp.ne.s32.totalorder %s101, %s103
      %p107 = scmp.eq.s32.totalorder %s20, 0
      %p108 = por %p106, %p107
      %p109 = scmp.ne.s32.totalorder %s101, %s103
      %p110 = scmp.eq.s32.totalorder %s25, 1
      %p111 = por %p109, %p110
      %p112 = scmp.ne.s32.totalorder %s103, %s104
      %p113 = scmp.eq.s32.totalorder %s25, 0
      %p114 = por %p112, %p113
      %p115 = scmp.ne.s32.totalorder %s103, %s104
      %p116 = scmp.eq.s32.totalorder %s26, 1
      %p117 = por %p115, %p116
      %p119 = scmp.ne.s32.totalorder %s104, %s118
      %p120 = scmp.eq.s32.totalorder %s26, 0
      %p121 = por %p119, %p120
      %s123 = sadd.s32 %s122, 1
      %p126 = scmp.eq.s32.totalorder %s20, 1
      %p127 = scmp.ne.s32.totalorder %s122, %s124
      %p128 = scmp.eq.s32.totalorder %s20, 0
      %p129 = por %p127, %p128
      %p130 = scmp.ne.s32.totalorder %s122, %s124
      %p131 = scmp.eq.s32.totalorder %s25, 1
      %p132 = por %p130, %p131
      %p133 = scmp.ne.s32.totalorder %s124, %s125
      %p134 = scmp.eq.s32.totalorder %s25, 0
      %p135 = por %p133, %p134
      %p136 = scmp.ne.s32.totalorder %s124, %s125
      %p137 = scmp.eq.s32.totalorder %s26, 1
      %p138 = por %p136, %p137
      %p140 = scmp.ne.s32.totalorder %s125, %s139
      %p141 = scmp.eq.s32.totalorder %s26, 0
      %p142 = por %p140, %p141
      %s144 = sadd.s32 %s143, 1
      %p147 = scmp.eq.s32.totalorder %s20, 1
      %p148 = scmp.ne.s32.totalorder %s143, %s145
      %p149 = scmp.eq.s32.totalorder %s20, 0
      %p150 = por %p148, %p149
      %p151 = scmp.ne.s32.totalorder %s143, %s145
      %p152 = scmp.eq.s32.totalorder %s25, 1
      %p153 = por %p151, %p152
      %p154 = scmp.ne.s32.totalorder %s145, %s146
      %p155 = scmp.eq.s32.totalorder %s25, 0
      %p156 = por %p154, %p155
      %p157 = scmp.ne.s32.totalorder %s145, %s146
      %p158 = scmp.eq.s32.totalorder %s26, 1
      %p159 = por %p157, %p158
      %p161 = scmp.ne.s32.totalorder %s146, %s160
      %p162 = scmp.eq.s32.totalorder %s26, 0
      %p163 = por %p161, %p162
      %s165 = sadd.s32 %s164, 1
      %p168 = scmp.eq.s32.totalorder %s20, 1
      %p169 = scmp.ne.s32.totalorder %s164, %s166
      %p170 = scmp.eq.s32.totalorder %s20, 0
      %p171 = por %p169, %p170
      %p172 = scmp.ne.s32.totalorder %s164, %s166
      %p173 = scmp.eq.s32.totalorder %s25, 1
      %p174 = por %p172, %p173
      %p175 = scmp.ne.s32.totalorder %s166, %s167
      %p176 = scmp.eq.s32.totalorder %s25, 0
      %p177 = por %p175, %p176
      %p178 = scmp.ne.s32.totalorder %s166, %s167
      %p179 = scmp.eq.s32.totalorder %s26, 1
      %p180 = por %p178, %p179
      %p182 = scmp.ne.s32.totalorder %s167, %s181
      %p183 = scmp.eq.s32.totalorder %s26, 0
      %p184 = por %p182, %p183
      %s186 = sadd.s32 %s185, 1
      %p189 = scmp.eq.s32.totalorder %s20, 1
      %p190 = scmp.ne.s32.totalorder %s185, %s187
      %p191 = scmp.eq.s32.totalorder %s20, 0
      %p192 = por %p190, %p191
      %p193 = scmp.ne.s32.totalorder %s185, %s187
      %p194 = scmp.eq.s32.totalorder %s25, 1
      %p195 = por %p193, %p194
      %p196 = scmp.ne.s32.totalorder %s187, %s188
      %p197 = scmp.eq.s32.totalorder %s25, 0
      %p198 = por %p196, %p197
      %p199 = scmp.ne.s32.totalorder %s187, %s188
      %p200 = scmp.eq.s32.totalorder %s26, 1
      %p201 = por %p199, %p200
      %p203 = scmp.ne.s32.totalorder %s188, %s202
      %p204 = scmp.eq.s32.totalorder %s26, 0
      %p205 = por %p203, %p204
      %s206 = ssub.s32 %s20, %s27
      %p207 = scmp.eq.s32.totalorder %s206, 0
      %s209 = sadd.s32 %s208, 1
      %s210 = scalar_select %p207, %s208, %s209
      %p213 = pneg %p207
      %p214 = scmp.eq.s32.totalorder %s20, 1
      %p215 = por %p213, %p214
      %p216 = scmp.ne.s32.totalorder %s208, %s211
      %p217 = scmp.eq.s32.totalorder %s20, 0
      %p218 = por %p216, %p217
      %p219 = scmp.ne.s32.totalorder %s208, %s211
      %p220 = scmp.eq.s32.totalorder %s25, 1
      %p221 = por %p219, %p220
      %p222 = scmp.ne.s32.totalorder %s211, %s212
      %p223 = scmp.eq.s32.totalorder %s25, 0
      %p224 = por %p222, %p223
      %p225 = scmp.ne.s32.totalorder %s211, %s212
      %p226 = scmp.eq.s32.totalorder %s26, 1
      %p227 = por %p225, %p226
      %p229 = scmp.ne.s32.totalorder %s212, %s228
      %p230 = scmp.eq.s32.totalorder %s26, 0
      %p231 = por %p229, %p230
      %p232 = scmp.le.s32.totalorder 1, %s20
      %p233 = scmp.lt.s32.totalorder %s20, 3
      %p234 = pnand %p232, %p233
      %p235 = pneg %p234
      // Predicated region
      $region9: #{tpu_custom_call.1} parent=5 // pred_check
        _
      $region10: #{tpu_custom_call.1} parent=5 // pred_check_branch
        %237 = sbr.rel (%p234) target = $region12
      $region11: #{tpu_custom_call.1} parent=5 // pred_region
        %s238 = ssub.s32 %s20, 1
        // Predicated region
        $region13: #{tpu_custom_call.1} parent=11 // pred_check
          %p239 = pneg %p93
        $region14: #{tpu_custom_call.1} parent=11 // pred_check_branch
          %241 = sbr.rel (%p239) target = $region16
        $region15: #{tpu_custom_call.1} parent=11 // pred_region
          _
        $region16: #{tpu_custom_call.1} parent=11 // pred_fallthru
          _
        // Predicated region
        $region17: #{tpu_custom_call.1} parent=11 // pred_check
          %p242 = pneg %p114
        $region18: #{tpu_custom_call.1} parent=11 // pred_check_branch
          %244 = sbr.rel (%p242) target = $region20
        $region19: #{tpu_custom_call.1} parent=11 // pred_region
          _
        $region20: #{tpu_custom_call.1} parent=11 // pred_fallthru
          _
        // Predicated region
        $region21: #{tpu_custom_call.1} parent=11 // pred_check
          %p245 = pneg %p135
        $region22: #{tpu_custom_call.1} parent=11 // pred_check_branch
          %247 = sbr.rel (%p245) target = $region24
        $region23: #{tpu_custom_call.1} parent=11 // pred_region
          _
        $region24: #{tpu_custom_call.1} parent=11 // pred_fallthru
          _
        // Predicated region
        $region25: #{tpu_custom_call.1} parent=11 // pred_check
          %p248 = pneg %p156
        $region26: #{tpu_custom_call.1} parent=11 // pred_check_branch
          %250 = sbr.rel (%p248) target = $region28
        $region27: #{tpu_custom_call.1} parent=11 // pred_region
          _
        $region28: #{tpu_custom_call.1} parent=11 // pred_fallthru
          _
        // Predicated region
        $region29: #{tpu_custom_call.1} parent=11 // pred_check
          %p251 = pneg %p177
        $region30: #{tpu_custom_call.1} parent=11 // pred_check_branch
          %253 = sbr.rel (%p251) target = $region32
        $region31: #{tpu_custom_call.1} parent=11 // pred_region
          _
        $region32: #{tpu_custom_call.1} parent=11 // pred_fallthru
          _
        // Predicated region
        $region33: #{tpu_custom_call.1} parent=11 // pred_check
          %p254 = pneg %p198
        $region34: #{tpu_custom_call.1} parent=11 // pred_check_branch
          %256 = sbr.rel (%p254) target = $region36
        $region35: #{tpu_custom_call.1} parent=11 // pred_region
          _
        $region36: #{tpu_custom_call.1} parent=11 // pred_fallthru
          _
      $region12: #{tpu_custom_call.1} parent=5 // pred_fallthru
        _
      %p257 = scmp.lt.s32.totalorder %s20, 2
      // Predicated region
      $region37: #{tpu_custom_call.1} parent=5 // pred_check
        %p258 = pneg %p257
      $region38: #{tpu_custom_call.1} parent=5 // pred_check_branch
        %260 = sbr.rel (%p258) target = $region40
      $region39: #{tpu_custom_call.1} parent=5 // pred_region
        // Predicated region
        $region41: #{tpu_custom_call.1} parent=39 // pred_check
          %p261 = pneg %p40
        $region42: #{tpu_custom_call.1} parent=39 // pred_check_branch
          %263 = sbr.rel (%p261) target = $region44
        $region43: #{tpu_custom_call.1} parent=39 // pred_region
          %p264 = scmp.lt.s32.totalorder %s20, 1
          %s265 = scalar_select %p264, %s20, 1
          %s266 = smul.addr %s265, 4
          %s267 = scalar_lea.vmem %s0, %s266
        $region44: #{tpu_custom_call.1} parent=39 // pred_fallthru
          _
        // Predicated region
        $region45: #{tpu_custom_call.1} parent=39 // pred_check
          %p268 = pneg %p66
        $region46: #{tpu_custom_call.1} parent=39 // pred_check_branch
          %270 = sbr.rel (%p268) target = $region48
        $region47: #{tpu_custom_call.1} parent=39 // pred_region
          %s271 = sand.u32 %s56, 1
          %s272 = scalar_lea.sflag [#allocation3], %s271
          %s273 = sand.u32 %s56, 1
          %s274 = smul.addr %s273, 4
          %s275 = scalar_lea.vmem [#allocation2], %s274
          %s277 = ssub.s32 64, 64
          %278 = vsyncadd %s272, %s277
          %s279 = smul.addr %s20, 64
          %s280 = scalar_lea.hbm %s1, %s279
          %s282 = sshll.u32 %s275, 4
          %s283 = int_to_ptr.vmem [resolvable:$true] %s282
          %285 = dma.hbm_to_vmem [thread:$0]  %s280, 64, %s283, %s272
        $region48: #{tpu_custom_call.1} parent=39 // pred_fallthru
          _
      $region40: #{tpu_custom_call.1} parent=5 // pred_fallthru
        _
      %p286 = scmp.le.s32.totalorder 1, %s20
      %p287 = scmp.lt.s32.totalorder %s20, 3
      %p288 = pnand %p286, %p287
      %p289 = pneg %p288
      // Predicated region
      $region49: #{tpu_custom_call.1} parent=5 // pred_check
        _
      $region50: #{tpu_custom_call.1} parent=5 // pred_check_branch
        %291 = sbr.rel (%p288) target = $region52
      $region51: #{tpu_custom_call.1} parent=5 // pred_region
        %s292 = ssub.s32 %s20, 1
        %s293 = sand.u32 %s59, 1
        %s294 = scalar_lea.sflag [#allocation3], %s293
        %s295 = sand.u32 %s59, 1
        %s296 = smul.addr %s295, 4
        %s297 = scalar_lea.vmem [#allocation2], %s296
        // Predicated region
        $region53: #{tpu_custom_call.1} parent=51 // pred_check
          %p298 = pneg %p72
        $region54: #{tpu_custom_call.1} parent=51 // pred_check_branch
          %300 = sbr.rel (%p298) target = $region56
        $region55: #{tpu_custom_call.1} parent=51 // pred_region
          %301 = dma.done %s294, 64
        $region56: #{tpu_custom_call.1} parent=51 // pred_fallthru
          _
        %p302 = scmp.lt.s32.totalorder %s25, 1
        %s303 = scalar_select %p302, %s25, 1
        %s304 = smul.addr %s303, 4
        %s305 = scalar_lea.vmem %s0, %s304
        %p306 = pneg %p46
        %p307 = pneg %p43
        %s308 = sand.u32 %s59, 1
        %s309 = scalar_lea.sflag [#allocation3], %s308
        %s310 = sand.u32 %s59, 1
        %s311 = smul.addr %s310, 4
        %s312 = scalar_lea.vmem [#allocation2], %s311
        %p313 = pneg %p72
        %p314 = pneg %p69
        %p315 = pneg %p93
        %p316 = pneg %p90
        %p317 = pneg %p114
        %p318 = pneg %p111
        %p319 = pneg %p135
        %p320 = pneg %p132
        %p321 = pneg %p156
        %p322 = pneg %p153
        %p323 = pneg %p177
        %p324 = pneg %p174
        %p325 = pneg %p198
        %p326 = pneg %p195
        %p327 = pneg %p224
        %p328 = pneg %p221
        %s329 = sand.u32 %s211, 1
        %s330 = scalar_lea.sflag [#allocation4], %s329
        %s331 = sand.u32 %s211, 1
        %s332 = smul.addr %s331, 8
        %s333 = scalar_lea.vmem [#allocation5], %s332
        %p334 = scmp.lt.s32.totalorder %s25, 1
        %s335 = scalar_select %p334, %s25, 1
        %s336 = smul.addr %s335, 4
        %s337 = scalar_lea.vmem %s0, %s336
        %v338 = vld [vmem:[%s337] sm:$0xf]
        %v339 = vld [vmem:[%s297] sm:$0xf]
        %v340 = vld [vmem:[%s2] sm:$0xf]
        %342 = vrot.lane.b32.xlu0 %v339, 1
        %v343 = vpop.permute.xlu0 %342
        %vm345 = vcmask 7168
        %v346 = vsel %vm345, 0.0, %v343
        %s347 = scalar_lea.vmem %s2, 4
        %v348 = vld [vmem:[%s347] sm:$0xf]
        %vm349 = vcmask 31744
        %v351 = vsel %vm349, %v348, 0
        %vm353 = vcmask 1043456
        %v355 = vsel %vm353, %v338, 0
        %357 = vmatprep.subr.mxu0 0.0
        %358 = vmatpush1.msra.mxu0 %v355
        %359 = vmatprep.subr.mxu0 0.0
        %360 = vmatpush1.msra.mxu0 0.0
        %361 = vmatprep.subr.mxu0 0.0
        %362 = vmatpush1.msra.mxu0 0.0
        %363 = vmatprep.subr.mxu0 0.0
        %364 = vmatpush1.msra.mxu0 0.0
        %365 = vmatprep.subr.mxu0 0.0
        %366 = vmatpush1.msra.mxu0 0.0
        %367 = vmatprep.subr.mxu0 0.0
        %368 = vmatpush1.msra.mxu0 0.0
        %369 = vmatprep.subr.mxu0 0.0
        %370 = vmatpush1.msra.mxu0 0.0
        %371 = vmatprep.subr.mxu0 0.0
        %372 = vmatpush1.msra.mxu0 0.0
        %373 = vmatprep.subr.mxu0 0.0
        %374 = vmatpush1.msra.mxu0 0.0
        %375 = vmatprep.subr.mxu0 0.0
        %376 = vmatpush1.msra.mxu0 0.0
        %377 = vmatprep.subr.mxu0 0.0
        %378 = vmatpush1.msra.mxu0 0.0
        %379 = vmatprep.subr.mxu0 0.0
        %380 = vmatpush1.msra.mxu0 0.0
        %381 = vmatprep.subr.mxu0 0.0
        %382 = vmatpush1.msra.mxu0 0.0
        %383 = vmatprep.subr.mxu0 0.0
        %384 = vmatpush1.msra.mxu0 0.0
        %385 = vmatprep.subr.mxu0 0.0
        %386 = vmatpush1.msra.mxu0 0.0
        %387 = vmatprep.subr.mxu0 0.0
        %388 = vmatpush1.msra.mxu0 0.0
        %389 = vmatprep.subr.mxu0 0.0
        %390 = vmatpush1.msra.mxu0 0.0
        %391 = vmatprep.subr.mxu0 0.0
        %392 = vmatpush1.msra.mxu0 0.0
        %393 = vmatprep.subr.mxu0 0.0
        %394 = vmatpush1.msra.mxu0 0.0
        %395 = vmatprep.subr.mxu0 0.0
        %396 = vmatpush1.msra.mxu0 0.0
        %397 = vmatprep.subr.mxu0 0.0
        %398 = vmatpush1.msra.mxu0 0.0
        %399 = vmatprep.subr.mxu0 0.0
        %400 = vmatpush1.msra.mxu0 0.0
        %401 = vmatprep.subr.mxu0 0.0
        %402 = vmatpush1.msra.mxu0 0.0
        %403 = vmatprep.subr.mxu0 0.0
        %404 = vmatpush1.msra.mxu0 0.0
        %405 = vmatprep.subr.mxu0 0.0
        %406 = vmatpush1.msra.mxu0 0.0
        %407 = vmatprep.subr.mxu0 0.0
        %408 = vmatpush1.msra.mxu0 0.0
        %409 = vmatprep.subr.mxu0 0.0
        %410 = vmatpush1.msra.mxu0 0.0
        %411 = vmatprep.subr.mxu0 0.0
        %412 = vmatpush1.msra.mxu0 0.0
        %413 = vmatprep.subr.mxu0 0.0
        %414 = vmatpush1.msra.mxu0 0.0
        %415 = vmatprep.subr.mxu0 0.0
        %416 = vmatpush1.msra.mxu0 0.0
        %417 = vmatprep.subr.mxu0 0.0
        %418 = vmatpush1.msra.mxu0 0.0
        %419 = vmatprep.subr.mxu0 0.0
        %420 = vmatpush1.msra.mxu0 0.0
        %421 = vmatprep.mubr.f32.mxu0 0.0
        %422 = vmatmul.mubr.f32.gmra.mrb[0].mxu0 %v351
        %v423 = vpop.f32.mrb[0].mxu0
        %v424 = vadd.f32 0.0, %v423
        %v425 = vpop.f32.mrb[0].mxu0
        %426 = vdwg.mxu0
        %v428 = vsel %vm349, %v340, 0
        %v431 = vsel %vm353, %v346, 0
        %433 = vmatprep.subr.mxu0 0.0
        %434 = vmatpush1.msra.mxu0 %v431
        %435 = vmatprep.subr.mxu0 0.0
        %436 = vmatpush1.msra.mxu0 0.0
        %437 = vmatprep.subr.mxu0 0.0
        %438 = vmatpush1.msra.mxu0 0.0
        %439 = vmatprep.subr.mxu0 0.0
        %440 = vmatpush1.msra.mxu0 0.0
        %441 = vmatprep.subr.mxu0 0.0
        %442 = vmatpush1.msra.mxu0 0.0
        %443 = vmatprep.subr.mxu0 0.0
        %444 = vmatpush1.msra.mxu0 0.0
        %445 = vmatprep.subr.mxu0 0.0
        %446 = vmatpush1.msra.mxu0 0.0
        %447 = vmatprep.subr.mxu0 0.0
        %448 = vmatpush1.msra.mxu0 0.0
        %449 = vmatprep.subr.mxu0 0.0
        %450 = vmatpush1.msra.mxu0 0.0
        %451 = vmatprep.subr.mxu0 0.0
        %452 = vmatpush1.msra.mxu0 0.0
        %453 = vmatprep.subr.mxu0 0.0
        %454 = vmatpush1.msra.mxu0 0.0
        %455 = vmatprep.subr.mxu0 0.0
        %456 = vmatpush1.msra.mxu0 0.0
        %457 = vmatprep.subr.mxu0 0.0
        %458 = vmatpush1.msra.mxu0 0.0
        %459 = vmatprep.subr.mxu0 0.0
        %460 = vmatpush1.msra.mxu0 0.0
        %461 = vmatprep.subr.mxu0 0.0
        %462 = vmatpush1.msra.mxu0 0.0
        %463 = vmatprep.subr.mxu0 0.0
        %464 = vmatpush1.msra.mxu0 0.0
        %465 = vmatprep.subr.mxu0 0.0
        %466 = vmatpush1.msra.mxu0 0.0
        %467 = vmatprep.subr.mxu0 0.0
        %468 = vmatpush1.msra.mxu0 0.0
        %469 = vmatprep.subr.mxu0 0.0
        %470 = vmatpush1.msra.mxu0 0.0
        %471 = vmatprep.subr.mxu0 0.0
        %472 = vmatpush1.msra.mxu0 0.0
        %473 = vmatprep.subr.mxu0 0.0
        %474 = vmatpush1.msra.mxu0 0.0
        %475 = vmatprep.subr.mxu0 0.0
        %476 = vmatpush1.msra.mxu0 0.0
        %477 = vmatprep.subr.mxu0 0.0
        %478 = vmatpush1.msra.mxu0 0.0
        %479 = vmatprep.subr.mxu0 0.0
        %480 = vmatpush1.msra.mxu0 0.0
        %481 = vmatprep.subr.mxu0 0.0
        %482 = vmatpush1.msra.mxu0 0.0
        %483 = vmatprep.subr.mxu0 0.0
        %484 = vmatpush1.msra.mxu0 0.0
        %485 = vmatprep.subr.mxu0 0.0
        %486 = vmatpush1.msra.mxu0 0.0
        %487 = vmatprep.subr.mxu0 0.0
        %488 = vmatpush1.msra.mxu0 0.0
        %489 = vmatprep.subr.mxu0 0.0
        %490 = vmatpush1.msra.mxu0 0.0
        %491 = vmatprep.subr.mxu0 0.0
        %492 = vmatpush1.msra.mxu0 0.0
        %493 = vmatprep.subr.mxu0 0.0
        %494 = vmatpush1.msra.mxu0 0.0
        %495 = vmatprep.subr.mxu0 0.0
        %496 = vmatpush1.msra.mxu0 0.0
        %497 = vmatprep.mubr.f32.mxu0 0.0
        %498 = vmatmul.mubr.f32.gmra.mrb[0].mxu0 %v428
        %v499 = vpop.f32.mrb[0].mxu0
        %v500 = vadd.f32 %v424, %v499
        %v501 = vpop.f32.mrb[0].mxu0
        %502 = vdwg.mxu0
        %s503 = scalar_lea.vmem %s2, 8
        %v504 = vld [vmem:[%s503] sm:$0xf]
        %v506 = vsel %vm349, %v504, 0
        %v508 = vsel %vm353, %v339, 0
        %510 = vmatprep.subr.mxu0 0.0
        %511 = vmatpush1.msra.mxu0 %v508
        %512 = vmatprep.subr.mxu0 0.0
        %513 = vmatpush1.msra.mxu0 0.0
        %514 = vmatprep.subr.mxu0 0.0
        %515 = vmatpush1.msra.mxu0 0.0
        %516 = vmatprep.subr.mxu0 0.0
        %517 = vmatpush1.msra.mxu0 0.0
        %518 = vmatprep.subr.mxu0 0.0
        %519 = vmatpush1.msra.mxu0 0.0
        %520 = vmatprep.subr.mxu0 0.0
        %521 = vmatpush1.msra.mxu0 0.0
        %522 = vmatprep.subr.mxu0 0.0
        %523 = vmatpush1.msra.mxu0 0.0
        %524 = vmatprep.subr.mxu0 0.0
        %525 = vmatpush1.msra.mxu0 0.0
        %526 = vmatprep.subr.mxu0 0.0
        %527 = vmatpush1.msra.mxu0 0.0
        %528 = vmatprep.subr.mxu0 0.0
        %529 = vmatpush1.msra.mxu0 0.0
        %530 = vmatprep.subr.mxu0 0.0
        %531 = vmatpush1.msra.mxu0 0.0
        %532 = vmatprep.subr.mxu0 0.0
        %533 = vmatpush1.msra.mxu0 0.0
        %534 = vmatprep.subr.mxu0 0.0
        %535 = vmatpush1.msra.mxu0 0.0
        %536 = vmatprep.subr.mxu0 0.0
        %537 = vmatpush1.msra.mxu0 0.0
        %538 = vmatprep.subr.mxu0 0.0
        %539 = vmatpush1.msra.mxu0 0.0
        %540 = vmatprep.subr.mxu0 0.0
        %541 = vmatpush1.msra.mxu0 0.0
        %542 = vmatprep.subr.mxu0 0.0
        %543 = vmatpush1.msra.mxu0 0.0
        %544 = vmatprep.subr.mxu0 0.0
        %545 = vmatpush1.msra.mxu0 0.0
        %546 = vmatprep.subr.mxu0 0.0
        %547 = vmatpush1.msra.mxu0 0.0
        %548 = vmatprep.subr.mxu0 0.0
        %549 = vmatpush1.msra.mxu0 0.0
        %550 = vmatprep.subr.mxu0 0.0
        %551 = vmatpush1.msra.mxu0 0.0
        %552 = vmatprep.subr.mxu0 0.0
        %553 = vmatpush1.msra.mxu0 0.0
        %554 = vmatprep.subr.mxu0 0.0
        %555 = vmatpush1.msra.mxu0 0.0
        %556 = vmatprep.subr.mxu0 0.0
        %557 = vmatpush1.msra.mxu0 0.0
        %558 = vmatprep.subr.mxu0 0.0
        %559 = vmatpush1.msra.mxu0 0.0
        %560 = vmatprep.subr.mxu0 0.0
        %561 = vmatpush1.msra.mxu0 0.0
        %562 = vmatprep.subr.mxu0 0.0
        %563 = vmatpush1.msra.mxu0 0.0
        %564 = vmatprep.subr.mxu0 0.0
        %565 = vmatpush1.msra.mxu0 0.0
        %566 = vmatprep.subr.mxu0 0.0
        %567 = vmatpush1.msra.mxu0 0.0
        %568 = vmatprep.subr.mxu0 0.0
        %569 = vmatpush1.msra.mxu0 0.0
        %570 = vmatprep.subr.mxu0 0.0
        %571 = vmatpush1.msra.mxu0 0.0
        %572 = vmatprep.subr.mxu0 0.0
        %573 = vmatpush1.msra.mxu0 0.0
        %574 = vmatprep.mubr.f32.mxu0 0.0
        %575 = vmatmul.mubr.f32.gmra.mrb[0].mxu0 %v506
        %v576 = vpop.f32.mrb[0].mxu0
        %v577 = vadd.f32 0.0, %v576
        %v578 = vpop.f32.mrb[0].mxu0
        %579 = vdwg.mxu0
        %v580 = vadd.f32 %v500, %v577
        %v581 = vld [vmem:[%s3] sm:$0xf]
        %583 = vset.pattern.permute.xlu0 0
        %584 = vperm.xlu0 %583, %v581
        %v585 = vpop.permute.xlu0 %584
        %v587 = vadd.f32 %v580, %v585
        %v588 = vld [vmem:[%s4] sm:$0xff]
        %590 = vrot.lane.b32.xlu0 %v587, 1
        %v591 = vpop.permute.xlu0 %590
        %v593 = vsel %vm345, 0.0, %v591
        %s594 = scalar_lea.vmem %s4, 8
        %v595 = vld [vmem:[%s594] sm:$0xff]
        %v597 = vsel %vm349, %v595, 0
        %v599 = vsel %vm353, %v587, 0
        %601 = vmatprep.subr.mxu0 0.0
        %602 = vmatpush1.msra.mxu0 %v599
        %603 = vmatprep.subr.mxu0 0.0
        %604 = vmatpush1.msra.mxu0 0.0
        %605 = vmatprep.subr.mxu0 0.0
        %606 = vmatpush1.msra.mxu0 0.0
        %607 = vmatprep.subr.mxu0 0.0
        %608 = vmatpush1.msra.mxu0 0.0
        %609 = vmatprep.subr.mxu0 0.0
        %610 = vmatpush1.msra.mxu0 0.0
        %611 = vmatprep.subr.mxu0 0.0
        %612 = vmatpush1.msra.mxu0 0.0
        %613 = vmatprep.subr.mxu0 0.0
        %614 = vmatpush1.msra.mxu0 0.0
        %615 = vmatprep.subr.mxu0 0.0
        %616 = vmatpush1.msra.mxu0 0.0
        %617 = vmatprep.subr.mxu0 0.0
        %618 = vmatpush1.msra.mxu0 0.0
        %619 = vmatprep.subr.mxu0 0.0
        %620 = vmatpush1.msra.mxu0 0.0
        %621 = vmatprep.subr.mxu0 0.0
        %622 = vmatpush1.msra.mxu0 0.0
        %623 = vmatprep.subr.mxu0 0.0
        %624 = vmatpush1.msra.mxu0 0.0
        %625 = vmatprep.subr.mxu0 0.0
        %626 = vmatpush1.msra.mxu0 0.0
        %627 = vmatprep.subr.mxu0 0.0
        %628 = vmatpush1.msra.mxu0 0.0
        %629 = vmatprep.subr.mxu0 0.0
        %630 = vmatpush1.msra.mxu0 0.0
        %631 = vmatprep.subr.mxu0 0.0
        %632 = vmatpush1.msra.mxu0 0.0
        %633 = vmatprep.subr.mxu0 0.0
        %634 = vmatpush1.msra.mxu0 0.0
        %635 = vmatprep.subr.mxu0 0.0
        %636 = vmatpush1.msra.mxu0 0.0
        %637 = vmatprep.subr.mxu0 0.0
        %638 = vmatpush1.msra.mxu0 0.0
        %639 = vmatprep.subr.mxu0 0.0
        %640 = vmatpush1.msra.mxu0 0.0
        %641 = vmatprep.subr.mxu0 0.0
        %642 = vmatpush1.msra.mxu0 0.0
        %643 = vmatprep.subr.mxu0 0.0
        %644 = vmatpush1.msra.mxu0 0.0
        %645 = vmatprep.subr.mxu0 0.0
        %646 = vmatpush1.msra.mxu0 0.0
        %647 = vmatprep.subr.mxu0 0.0
        %648 = vmatpush1.msra.mxu0 0.0
        %649 = vmatprep.subr.mxu0 0.0
        %650 = vmatpush1.msra.mxu0 0.0
        %651 = vmatprep.subr.mxu0 0.0
        %652 = vmatpush1.msra.mxu0 0.0
        %653 = vmatprep.subr.mxu0 0.0
        %654 = vmatpush1.msra.mxu0 0.0
        %655 = vmatprep.subr.mxu0 0.0
        %656 = vmatpush1.msra.mxu0 0.0
        %657 = vmatprep.subr.mxu0 0.0
        %658 = vmatpush1.msra.mxu0 0.0
        %659 = vmatprep.subr.mxu0 0.0
        %660 = vmatpush1.msra.mxu0 0.0
        %661 = vmatprep.subr.mxu0 0.0
        %662 = vmatpush1.msra.mxu0 0.0
        %663 = vmatprep.subr.mxu0 0.0
        %664 = vmatpush1.msra.mxu0 0.0
        %665 = vmatprep.mubr.f32.mxu0 0.0
        %666 = vmatmul.mubr.f32.gmra.mrb[0].mxu0 %v597
        %v667 = vpop.f32.mrb[0].mxu0
        %v668 = vadd.f32 0.0, %v667
        %v669 = vpop.f32.mrb[0].mxu0
        %670 = vdwg.mxu0
        %v672 = vsel %vm349, %v588, 0
        %v675 = vsel %vm353, %v593, 0
        %677 = vmatprep.subr.mxu0 0.0
        %678 = vmatpush1.msra.mxu0 %v675
        %679 = vmatprep.subr.mxu0 0.0
        %680 = vmatpush1.msra.mxu0 0.0
        %681 = vmatprep.subr.mxu0 0.0
        %682 = vmatpush1.msra.mxu0 0.0
        %683 = vmatprep.subr.mxu0 0.0
        %684 = vmatpush1.msra.mxu0 0.0
        %685 = vmatprep.subr.mxu0 0.0
        %686 = vmatpush1.msra.mxu0 0.0
        %687 = vmatprep.subr.mxu0 0.0
        %688 = vmatpush1.msra.mxu0 0.0
        %689 = vmatprep.subr.mxu0 0.0
        %690 = vmatpush1.msra.mxu0 0.0
        %691 = vmatprep.subr.mxu0 0.0
        %692 = vmatpush1.msra.mxu0 0.0
        %693 = vmatprep.subr.mxu0 0.0
        %694 = vmatpush1.msra.mxu0 0.0
        %695 = vmatprep.subr.mxu0 0.0
        %696 = vmatpush1.msra.mxu0 0.0
        %697 = vmatprep.subr.mxu0 0.0
        %698 = vmatpush1.msra.mxu0 0.0
        %699 = vmatprep.subr.mxu0 0.0
        %700 = vmatpush1.msra.mxu0 0.0
        %701 = vmatprep.subr.mxu0 0.0
        %702 = vmatpush1.msra.mxu0 0.0
        %703 = vmatprep.subr.mxu0 0.0
        %704 = vmatpush1.msra.mxu0 0.0
        %705 = vmatprep.subr.mxu0 0.0
        %706 = vmatpush1.msra.mxu0 0.0
        %707 = vmatprep.subr.mxu0 0.0
        %708 = vmatpush1.msra.mxu0 0.0
        %709 = vmatprep.subr.mxu0 0.0
        %710 = vmatpush1.msra.mxu0 0.0
        %711 = vmatprep.subr.mxu0 0.0
        %712 = vmatpush1.msra.mxu0 0.0
        %713 = vmatprep.subr.mxu0 0.0
        %714 = vmatpush1.msra.mxu0 0.0
        %715 = vmatprep.subr.mxu0 0.0
        %716 = vmatpush1.msra.mxu0 0.0
        %717 = vmatprep.subr.mxu0 0.0
        %718 = vmatpush1.msra.mxu0 0.0
        %719 = vmatprep.subr.mxu0 0.0
        %720 = vmatpush1.msra.mxu0 0.0
        %721 = vmatprep.subr.mxu0 0.0
        %722 = vmatpush1.msra.mxu0 0.0
        %723 = vmatprep.subr.mxu0 0.0
        %724 = vmatpush1.msra.mxu0 0.0
        %725 = vmatprep.subr.mxu0 0.0
        %726 = vmatpush1.msra.mxu0 0.0
        %727 = vmatprep.subr.mxu0 0.0
        %728 = vmatpush1.msra.mxu0 0.0
        %729 = vmatprep.subr.mxu0 0.0
        %730 = vmatpush1.msra.mxu0 0.0
        %731 = vmatprep.subr.mxu0 0.0
        %732 = vmatpush1.msra.mxu0 0.0
        %733 = vmatprep.subr.mxu0 0.0
        %734 = vmatpush1.msra.mxu0 0.0
        %735 = vmatprep.subr.mxu0 0.0
        %736 = vmatpush1.msra.mxu0 0.0
        %737 = vmatprep.subr.mxu0 0.0
        %738 = vmatpush1.msra.mxu0 0.0
        %739 = vmatprep.subr.mxu0 0.0
        %740 = vmatpush1.msra.mxu0 0.0
        %741 = vmatprep.mubr.f32.mxu0 0.0
        %742 = vmatmul.mubr.f32.gmra.mrb[0].mxu0 %v672
        %v743 = vpop.f32.mrb[0].mxu0
        %v744 = vadd.f32 %v668, %v743
        %v745 = vpop.f32.mrb[0].mxu0
        %746 = vdwg.mxu0
        %s747 = scalar_lea.vmem %s4, 16
        %v748 = vld [vmem:[%s747] sm:$0xff]
        %749 = vrot.lane.b32.xlu0 %v587, 127
        %v750 = vpop.permute.xlu0 %749
        %vm752 = vcmask 56320
        %v753 = vsel %vm752, %v750, 0.0
        %v755 = vsel %vm349, %v748, 0
        %v758 = vsel %vm353, %v753, 0
        %760 = vmatprep.subr.mxu0 0.0
        %761 = vmatpush1.msra.mxu0 %v758
        %762 = vmatprep.subr.mxu0 0.0
        %763 = vmatpush1.msra.mxu0 0.0
        %764 = vmatprep.subr.mxu0 0.0
        %765 = vmatpush1.msra.mxu0 0.0
        %766 = vmatprep.subr.mxu0 0.0
        %767 = vmatpush1.msra.mxu0 0.0
        %768 = vmatprep.subr.mxu0 0.0
        %769 = vmatpush1.msra.mxu0 0.0
        %770 = vmatprep.subr.mxu0 0.0
        %771 = vmatpush1.msra.mxu0 0.0
        %772 = vmatprep.subr.mxu0 0.0
        %773 = vmatpush1.msra.mxu0 0.0
        %774 = vmatprep.subr.mxu0 0.0
        %775 = vmatpush1.msra.mxu0 0.0
        %776 = vmatprep.subr.mxu0 0.0
        %777 = vmatpush1.msra.mxu0 0.0
        %778 = vmatprep.subr.mxu0 0.0
        %779 = vmatpush1.msra.mxu0 0.0
        %780 = vmatprep.subr.mxu0 0.0
        %781 = vmatpush1.msra.mxu0 0.0
        %782 = vmatprep.subr.mxu0 0.0
        %783 = vmatpush1.msra.mxu0 0.0
        %784 = vmatprep.subr.mxu0 0.0
        %785 = vmatpush1.msra.mxu0 0.0
        %786 = vmatprep.subr.mxu0 0.0
        %787 = vmatpush1.msra.mxu0 0.0
        %788 = vmatprep.subr.mxu0 0.0
        %789 = vmatpush1.msra.mxu0 0.0
        %790 = vmatprep.subr.mxu0 0.0
        %791 = vmatpush1.msra.mxu0 0.0
        %792 = vmatprep.subr.mxu0 0.0
        %793 = vmatpush1.msra.mxu0 0.0
        %794 = vmatprep.subr.mxu0 0.0
        %795 = vmatpush1.msra.mxu0 0.0
        %796 = vmatprep.subr.mxu0 0.0
        %797 = vmatpush1.msra.mxu0 0.0
        %798 = vmatprep.subr.mxu0 0.0
        %799 = vmatpush1.msra.mxu0 0.0
        %800 = vmatprep.subr.mxu0 0.0
        %801 = vmatpush1.msra.mxu0 0.0
        %802 = vmatprep.subr.mxu0 0.0
        %803 = vmatpush1.msra.mxu0 0.0
        %804 = vmatprep.subr.mxu0 0.0
        %805 = vmatpush1.msra.mxu0 0.0
        %806 = vmatprep.subr.mxu0 0.0
        %807 = vmatpush1.msra.mxu0 0.0
        %808 = vmatprep.subr.mxu0 0.0
        %809 = vmatpush1.msra.mxu0 0.0
        %810 = vmatprep.subr.mxu0 0.0
        %811 = vmatpush1.msra.mxu0 0.0
        %812 = vmatprep.subr.mxu0 0.0
        %813 = vmatpush1.msra.mxu0 0.0
        %814 = vmatprep.subr.mxu0 0.0
        %815 = vmatpush1.msra.mxu0 0.0
        %816 = vmatprep.subr.mxu0 0.0
        %817 = vmatpush1.msra.mxu0 0.0
        %818 = vmatprep.subr.mxu0 0.0
        %819 = vmatpush1.msra.mxu0 0.0
        %820 = vmatprep.subr.mxu0 0.0
        %821 = vmatpush1.msra.mxu0 0.0
        %822 = vmatprep.subr.mxu0 0.0
        %823 = vmatpush1.msra.mxu0 0.0
        %824 = vmatprep.mubr.f32.mxu0 0.0
        %825 = vmatmul.mubr.f32.gmra.mrb[0].mxu0 %v755
        %v826 = vpop.f32.mrb[0].mxu0
        %v827 = vadd.f32 0.0, %v826
        %v828 = vpop.f32.mrb[0].mxu0
        %829 = vdwg.mxu0
        %v830 = vadd.f32 %v744, %v827
        %v831 = vld [vmem:[%s5] sm:$0xff]
        %833 = vset.pattern.permute.xlu0 0
        %834 = vperm.xlu0 %833, %v831
        %v835 = vpop.permute.xlu0 %834
        %v837 = vadd.f32 %v830, %v835
        %v838 = vmax.f32 %v837, 0.0
        %v839 = vld [vmem:[%s6] sm:$0xff]
        %841 = vrot.lane.b32.xlu0 %v838, 1
        %v842 = vpop.permute.xlu0 %841
        %v844 = vsel %vm345, 0.0, %v842
        %s845 = scalar_lea.vmem %s6, 8
        %v846 = vld [vmem:[%s845] sm:$0xff]
        %vm847 = vcmask 64512
        %v849 = vsel %vm847, %v846, 0
        %851 = vmatprep.subr.mxu0 0.0
        %852 = vmatpush1.msra.mxu0 %v838
        %853 = vmatprep.subr.mxu0 0.0
        %854 = vmatpush1.msra.mxu0 0.0
        %855 = vmatprep.subr.mxu0 0.0
        %856 = vmatpush1.msra.mxu0 0.0
        %857 = vmatprep.subr.mxu0 0.0
        %858 = vmatpush1.msra.mxu0 0.0
        %859 = vmatprep.subr.mxu0 0.0
        %860 = vmatpush1.msra.mxu0 0.0
        %861 = vmatprep.subr.mxu0 0.0
        %862 = vmatpush1.msra.mxu0 0.0
        %863 = vmatprep.subr.mxu0 0.0
        %864 = vmatpush1.msra.mxu0 0.0
        %865 = vmatprep.subr.mxu0 0.0
        %866 = vmatpush1.msra.mxu0 0.0
        %867 = vmatprep.subr.mxu0 0.0
        %868 = vmatpush1.msra.mxu0 0.0
        %869 = vmatprep.subr.mxu0 0.0
        %870 = vmatpush1.msra.mxu0 0.0
        %871 = vmatprep.subr.mxu0 0.0
        %872 = vmatpush1.msra.mxu0 0.0
        %873 = vmatprep.subr.mxu0 0.0
        %874 = vmatpush1.msra.mxu0 0.0
        %875 = vmatprep.subr.mxu0 0.0
        %876 = vmatpush1.msra.mxu0 0.0
        %877 = vmatprep.subr.mxu0 0.0
        %878 = vmatpush1.msra.mxu0 0.0
        %879 = vmatprep.subr.mxu0 0.0
        %880 = vmatpush1.msra.mxu0 0.0
        %881 = vmatprep.subr.mxu0 0.0
        %882 = vmatpush1.msra.mxu0 0.0
        %883 = vmatprep.subr.mxu0 0.0
        %884 = vmatpush1.msra.mxu0 0.0
        %885 = vmatprep.subr.mxu0 0.0
        %886 = vmatpush1.msra.mxu0 0.0
        %887 = vmatprep.subr.mxu0 0.0
        %888 = vmatpush1.msra.mxu0 0.0
        %889 = vmatprep.subr.mxu0 0.0
        %890 = vmatpush1.msra.mxu0 0.0
        %891 = vmatprep.subr.mxu0 0.0
        %892 = vmatpush1.msra.mxu0 0.0
        %893 = vmatprep.subr.mxu0 0.0
        %894 = vmatpush1.msra.mxu0 0.0
        %895 = vmatprep.subr.mxu0 0.0
        %896 = vmatpush1.msra.mxu0 0.0
        %897 = vmatprep.subr.mxu0 0.0
        %898 = vmatpush1.msra.mxu0 0.0
        %899 = vmatprep.subr.mxu0 0.0
        %900 = vmatpush1.msra.mxu0 0.0
        %901 = vmatprep.subr.mxu0 0.0
        %902 = vmatpush1.msra.mxu0 0.0
        %903 = vmatprep.subr.mxu0 0.0
        %904 = vmatpush1.msra.mxu0 0.0
        %905 = vmatprep.subr.mxu0 0.0
        %906 = vmatpush1.msra.mxu0 0.0
        %907 = vmatprep.subr.mxu0 0.0
        %908 = vmatpush1.msra.mxu0 0.0
        %909 = vmatprep.subr.mxu0 0.0
        %910 = vmatpush1.msra.mxu0 0.0
        %911 = vmatprep.subr.mxu0 0.0
        %912 = vmatpush1.msra.mxu0 0.0
        %913 = vmatprep.subr.mxu0 0.0
        %914 = vmatpush1.msra.mxu0 0.0
        %915 = vmatprep.mubr.f32.mxu0 0.0
        %916 = vmatmul.mubr.f32.gmra.mrb[0].mxu0 %v849
        %v917 = vpop.f32.mrb[0].mxu0
        %v918 = vadd.f32 0.0, %v917
        %v919 = vpop.f32.mrb[0].mxu0
        %920 = vdwg.mxu0
        %v922 = vsel %vm847, %v839, 0
        %924 = vmatprep.subr.mxu0 0.0
        %925 = vmatpush1.msra.mxu0 %v844
        %926 = vmatprep.subr.mxu0 0.0
        %927 = vmatpush1.msra.mxu0 0.0
        %928 = vmatprep.subr.mxu0 0.0
        %929 = vmatpush1.msra.mxu0 0.0
        %930 = vmatprep.subr.mxu0 0.0
        %931 = vmatpush1.msra.mxu0 0.0
        %932 = vmatprep.subr.mxu0 0.0
        %933 = vmatpush1.msra.mxu0 0.0
        %934 = vmatprep.subr.mxu0 0.0
        %935 = vmatpush1.msra.mxu0 0.0
        %936 = vmatprep.subr.mxu0 0.0
        %937 = vmatpush1.msra.mxu0 0.0
        %938 = vmatprep.subr.mxu0 0.0
        %939 = vmatpush1.msra.mxu0 0.0
        %940 = vmatprep.subr.mxu0 0.0
        %941 = vmatpush1.msra.mxu0 0.0
        %942 = vmatprep.subr.mxu0 0.0
        %943 = vmatpush1.msra.mxu0 0.0
        %944 = vmatprep.subr.mxu0 0.0
        %945 = vmatpush1.msra.mxu0 0.0
        %946 = vmatprep.subr.mxu0 0.0
        %947 = vmatpush1.msra.mxu0 0.0
        %948 = vmatprep.subr.mxu0 0.0
        %949 = vmatpush1.msra.mxu0 0.0
        %950 = vmatprep.subr.mxu0 0.0
        %951 = vmatpush1.msra.mxu0 0.0
        %952 = vmatprep.subr.mxu0 0.0
        %953 = vmatpush1.msra.mxu0 0.0
        %954 = vmatprep.subr.mxu0 0.0
        %955 = vmatpush1.msra.mxu0 0.0
        %956 = vmatprep.subr.mxu0 0.0
        %957 = vmatpush1.msra.mxu0 0.0
        %958 = vmatprep.subr.mxu0 0.0
        %959 = vmatpush1.msra.mxu0 0.0
        %960 = vmatprep.subr.mxu0 0.0
        %961 = vmatpush1.msra.mxu0 0.0
        %962 = vmatprep.subr.mxu0 0.0
        %963 = vmatpush1.msra.mxu0 0.0
        %964 = vmatprep.subr.mxu0 0.0
        %965 = vmatpush1.msra.mxu0 0.0
        %966 = vmatprep.subr.mxu0 0.0
        %967 = vmatpush1.msra.mxu0 0.0
        %968 = vmatprep.subr.mxu0 0.0
        %969 = vmatpush1.msra.mxu0 0.0
        %970 = vmatprep.subr.mxu0 0.0
        %971 = vmatpush1.msra.mxu0 0.0
        %972 = vmatprep.subr.mxu0 0.0
        %973 = vmatpush1.msra.mxu0 0.0
        %974 = vmatprep.subr.mxu0 0.0
        %975 = vmatpush1.msra.mxu0 0.0
        %976 = vmatprep.subr.mxu0 0.0
        %977 = vmatpush1.msra.mxu0 0.0
        %978 = vmatprep.subr.mxu0 0.0
        %979 = vmatpush1.msra.mxu0 0.0
        %980 = vmatprep.subr.mxu0 0.0
        %981 = vmatpush1.msra.mxu0 0.0
        %982 = vmatprep.subr.mxu0 0.0
        %983 = vmatpush1.msra.mxu0 0.0
        %984 = vmatprep.subr.mxu0 0.0
        %985 = vmatpush1.msra.mxu0 0.0
        %986 = vmatprep.subr.mxu0 0.0
        %987 = vmatpush1.msra.mxu0 0.0
        %988 = vmatprep.mubr.f32.mxu0 0.0
        %989 = vmatmul.mubr.f32.gmra.mrb[0].mxu0 %v922
        %v990 = vpop.f32.mrb[0].mxu0
        %v991 = vadd.f32 %v918, %v990
        %v992 = vpop.f32.mrb[0].mxu0
        %993 = vdwg.mxu0
        %s994 = scalar_lea.vmem %s6, 16
        %v995 = vld [vmem:[%s994] sm:$0xff]
        %996 = vrot.lane.b32.xlu0 %v838, 127
        %v997 = vpop.permute.xlu0 %996
        %v999 = vsel %vm752, %v997, 0.0
        %v1001 = vsel %vm847, %v995, 0
        %1003 = vmatprep.subr.mxu0 0.0
        %1004 = vmatpush1.msra.mxu0 %v999
        %1005 = vmatprep.subr.mxu0 0.0
        %1006 = vmatpush1.msra.mxu0 0.0
        %1007 = vmatprep.subr.mxu0 0.0
        %1008 = vmatpush1.msra.mxu0 0.0
        %1009 = vmatprep.subr.mxu0 0.0
        %1010 = vmatpush1.msra.mxu0 0.0
        %1011 = vmatprep.subr.mxu0 0.0
        %1012 = vmatpush1.msra.mxu0 0.0
        %1013 = vmatprep.subr.mxu0 0.0
        %1014 = vmatpush1.msra.mxu0 0.0
        %1015 = vmatprep.subr.mxu0 0.0
        %1016 = vmatpush1.msra.mxu0 0.0
        %1017 = vmatprep.subr.mxu0 0.0
        %1018 = vmatpush1.msra.mxu0 0.0
        %1019 = vmatprep.subr.mxu0 0.0
        %1020 = vmatpush1.msra.mxu0 0.0
        %1021 = vmatprep.subr.mxu0 0.0
        %1022 = vmatpush1.msra.mxu0 0.0
        %1023 = vmatprep.subr.mxu0 0.0
        %1024 = vmatpush1.msra.mxu0 0.0
        %1025 = vmatprep.subr.mxu0 0.0
        %1026 = vmatpush1.msra.mxu0 0.0
        %1027 = vmatprep.subr.mxu0 0.0
        %1028 = vmatpush1.msra.mxu0 0.0
        %1029 = vmatprep.subr.mxu0 0.0
        %1030 = vmatpush1.msra.mxu0 0.0
        %1031 = vmatprep.subr.mxu0 0.0
        %1032 = vmatpush1.msra.mxu0 0.0
        %1033 = vmatprep.subr.mxu0 0.0
        %1034 = vmatpush1.msra.mxu0 0.0
        %1035 = vmatprep.subr.mxu0 0.0
        %1036 = vmatpush1.msra.mxu0 0.0
        %1037 = vmatprep.subr.mxu0 0.0
        %1038 = vmatpush1.msra.mxu0 0.0
        %1039 = vmatprep.subr.mxu0 0.0
        %1040 = vmatpush1.msra.mxu0 0.0
        %1041 = vmatprep.subr.mxu0 0.0
        %1042 = vmatpush1.msra.mxu0 0.0
        %1043 = vmatprep.subr.mxu0 0.0
        %1044 = vmatpush1.msra.mxu0 0.0
        %1045 = vmatprep.subr.mxu0 0.0
        %1046 = vmatpush1.msra.mxu0 0.0
        %1047 = vmatprep.subr.mxu0 0.0
        %1048 = vmatpush1.msra.mxu0 0.0
        %1049 = vmatprep.subr.mxu0 0.0
        %1050 = vmatpush1.msra.mxu0 0.0
        %1051 = vmatprep.subr.mxu0 0.0
        %1052 = vmatpush1.msra.mxu0 0.0
        %1053 = vmatprep.subr.mxu0 0.0
        %1054 = vmatpush1.msra.mxu0 0.0
        %1055 = vmatprep.subr.mxu0 0.0
        %1056 = vmatpush1.msra.mxu0 0.0
        %1057 = vmatprep.subr.mxu0 0.0
        %1058 = vmatpush1.msra.mxu0 0.0
        %1059 = vmatprep.subr.mxu0 0.0
        %1060 = vmatpush1.msra.mxu0 0.0
        %1061 = vmatprep.subr.mxu0 0.0
        %1062 = vmatpush1.msra.mxu0 0.0
        %1063 = vmatprep.subr.mxu0 0.0
        %1064 = vmatpush1.msra.mxu0 0.0
        %1065 = vmatprep.subr.mxu0 0.0
        %1066 = vmatpush1.msra.mxu0 0.0
        %1067 = vmatprep.mubr.f32.mxu0 0.0
        %1068 = vmatmul.mubr.f32.gmra.mrb[0].mxu0 %v1001
        %v1069 = vpop.f32.mrb[0].mxu0
        %v1070 = vadd.f32 0.0, %v1069
        %v1071 = vpop.f32.mrb[0].mxu0
        %1072 = vdwg.mxu0
        %v1073 = vadd.f32 %v991, %v1070
        %v1074 = vld [vmem:[%s7] sm:$0xff]
        %1076 = vset.pattern.permute.xlu0 0
        %1077 = vperm.xlu0 %1076, %v1074
        %v1078 = vpop.permute.xlu0 %1077
        %v1080 = vadd.f32 %v1073, %v1078
        %v1081 = vmax.f32 %v1080, 0.0
        %1082 = vst.msk [vmem:[%s333] sm:$0xff] %vm847, %v1081
        %s1083 = sand.u32 %s211, 1
        %s1084 = scalar_lea.sflag [#allocation4], %s1083
        %s1085 = sand.u32 %s211, 1
        %s1086 = smul.addr %s1085, 8
        %s1087 = scalar_lea.vmem [#allocation5], %s1086
        // Predicated region
        $region57: #{tpu_custom_call.1} parent=51 // pred_check
          %p1088 = pneg %p221
        $region58: #{tpu_custom_call.1} parent=51 // pred_check_branch
          %1090 = sbr.rel (%p1088) target = $region60
        $region59: #{tpu_custom_call.1} parent=51 // pred_region
          %s1092 = ssub.s32 128, 128
          %1093 = vsyncadd %s1084, %s1092
          %s1094 = smul.addr %s25, 128
          %s1095 = scalar_lea.hbm %s8, %s1094
          %s1097 = sshll.u32 %s1087, 4
          %s1098 = int_to_ptr.vmem [resolvable:$true] %s1097
          %1100 = dma.vmem_to_hbm [thread:$0]  %s1098, 128, %s1095, %s1084
        $region60: #{tpu_custom_call.1} parent=51 // pred_fallthru
          _
      $region52: #{tpu_custom_call.1} parent=5 // pred_fallthru
        _
      %p1101 = scmp.le.s32.totalorder 2, %s20
      // Predicated region
      $region61: #{tpu_custom_call.1} parent=5 // pred_check
        %p1102 = pneg %p1101
      $region62: #{tpu_custom_call.1} parent=5 // pred_check_branch
        %1104 = sbr.rel (%p1102) target = $region64
      $region63: #{tpu_custom_call.1} parent=5 // pred_region
        %s1105 = ssub.s32 %s20, 2
        // Predicated region
        $region65: #{tpu_custom_call.1} parent=63 // pred_check
          %p1106 = pneg %p227
        $region66: #{tpu_custom_call.1} parent=63 // pred_check_branch
          %1108 = sbr.rel (%p1106) target = $region68
        $region67: #{tpu_custom_call.1} parent=63 // pred_region
          %s1109 = sand.u32 %s212, 1
          %s1110 = scalar_lea.sflag [#allocation4], %s1109
          %s1111 = sand.u32 %s212, 1
          %s1112 = smul.addr %s1111, 8
          %s1113 = scalar_lea.vmem [#allocation5], %s1112
          %1114 = dma.done %s1110, 128
        $region68: #{tpu_custom_call.1} parent=63 // pred_fallthru
          _
      $region64: #{tpu_custom_call.1} parent=5 // pred_fallthru
        _
    $region6: #{tpu_custom_call.1} parent=1 // loop_footer
      %s24 = sadd.s32 1, %s20
    $region7: #{tpu_custom_call.1} parent=1 // loop_footer_branch
      %19 = sbr.rel target = $region3
    $region8: #{tpu_custom_call.1} parent=1 // loop_exit
      _
    %1115 = vsyncpa [#allocation3], 1
    %s1116 = scalar_lea.sflag [#allocation3], 1
    %1117 = vsyncpa %s1116, 1
    %1118 = vsyncpa [#allocation4], 1
    %s1119 = scalar_lea.sflag [#allocation4], 1
    %1120 = vsyncpa %s1119, 1

</llo_original>
